<compile_context>
chip_gen: v6e
topology: v6e:2x2x1
jax: 0.10.0
libtpu: 0.0.40
codegen_flags: <defaults>
</compile_context>

<pallas_src>
import jax
import jax.numpy as jnp
from jax.experimental import pallas as pl
from jax.experimental.pallas import tpu as pltpu


def _upx2_kernel(x_ref, w_ref, aux_ref, tap_ref, o_ref):
    """Fused deconv(2x2,s2) + BN(inference) + PReLU for one (batch, lane-tile) block.

    x_ref:   (1, Cin, LT)   2x2 nearest-neighbour-dilated input; lane order (h, dh, w, dw)
                            == flattened (2H, 2W) output order.
    w_ref:   (4*Cout, Cin)  BN-scaled deconv weights; rows ordered (dh, dw, cout).
    aux_ref: (Cout, 2)      [:, 0] = BN shift (beta - mean*scale), [:, 1] = PReLU alpha (f32).
    tap_ref: (1, LT)        int32 tap id (2*dh + dw) for every output lane (tile-periodic).
    o_ref:   (1, Cout, LT)  output lanes already in flattened (2H, 2W) NCHW order.
    """
    cout = o_ref.shape[1]
    x = x_ref[0]                                                     # (Cin, LT)

    # One MXU matmul computes all four taps for every output pixel position.
    y = jnp.dot(w_ref[...], x, preferred_element_type=jnp.float32)   # (4*Cout, LT)
    # NOTE: for very small Cin an unrolled VPU multiply-accumulate would avoid MXU
    # push/pop latency, but this op is HBM-bound so the MXU path has ample slack.

    tap = tap_ref[...]                                               # (1, LT) int32
    dw_is0 = (tap & 1) == 0
    dh_is0 = (tap & 2) == 0
    # Per output lane, select the tap (dh, dw) that actually produces that pixel.
    y_h0 = jnp.where(dw_is0, y[0 * cout:1 * cout], y[1 * cout:2 * cout])
    y_h1 = jnp.where(dw_is0, y[2 * cout:3 * cout], y[3 * cout:4 * cout])
    y_sel = jnp.where(dh_is0, y_h0, y_h1)                            # (Cout, LT) f32

    shift = aux_ref[:, 0:1]                                          # (Cout, 1) f32
    alpha = aux_ref[:, 1:2]                                          # (Cout, 1) f32
    y_sel = y_sel + shift                                            # fused BN shift
    y_sel = jnp.where(y_sel >= 0, y_sel, alpha * y_sel)              # fused PReLU
    o_ref[0] = y_sel.astype(o_ref.dtype)


def upx2_forward(x, weight, bn_gamma, bn_beta, bn_mean, bn_var, prelu_alpha,
                 eps=1e-3, out_dtype=None, lane_tile_target=8192):
    """Forward pass of UPx2.

    x:            (N, Cin, H, W) float32
    weight:       (Cin, Cout, 2, 2)   PyTorch ConvTranspose2d layout
    bn_*:         (Cout,)             BatchNorm2d affine + running stats (inference form)
    prelu_alpha:  (Cout,)             per-channel PReLU slope
    out_dtype:    optional output dtype (e.g. jnp.bfloat16 to halve output HBM writes)
    returns:      (N, Cout, 2H, 2W)
    """
    N, Cin, H, W = x.shape
    Cin_w, Cout, kH, kW = weight.shape
    assert Cin_w == Cin and (kH, kW) == (2, 2)
    out_dtype = x.dtype if out_dtype is None else out_dtype
    lanes = 4 * H * W                      # flattened (2H, 2W) output spatial size

    # ---- fold BatchNorm (inference form) into the deconv weights; keep shift/alpha f32 ----
    scale = bn_gamma / jnp.sqrt(bn_var + eps)                        # (Cout,)
    shift = bn_beta - bn_mean * scale                                # (Cout,)
    w_scaled = weight * scale[None, :, None, None]                   # (Cin, Cout, 2, 2)
    # rows ordered (dh, dw, cout): row = (2*dh + dw) * Cout + cout
    w4 = jnp.transpose(w_scaled, (2, 3, 1, 0)).reshape(4 * Cout, Cin).astype(jnp.float32)
    aux = jnp.stack([shift, prelu_alpha], axis=1).astype(jnp.float32)  # (Cout, 2), f32

    # ---- lane tile: multiple of 4W (tap pattern tile-periodic) and of 128 (lane-aligned),
    #      sized well inside v7x's 32 MiB default scoped VMEM (double-buffered) ----
    def _ok(ht):
        return ht >= 1 and H % ht == 0 and (4 * W * ht) % 128 == 0
    h_tile = H
    while 4 * W * h_tile > lane_tile_target and _ok(h_tile // 2):
        h_tile //= 2
    lt = 4 * W * h_tile
    n_tiles = lanes // lt

    # ---- 2x2 nearest-neighbour dilation of the (small) input tensor ----
    # lane L of x_up maps 1:1 to output lane L, so no pixel shuffle is needed anywhere.
    x_up = jnp.broadcast_to(x[:, :, :, None, :, None], (N, Cin, H, 2, W, 2))
    x_up = x_up.reshape(N, Cin, lanes)

    # per-lane tap id (2*dh + dw); grid-invariant because lt is a multiple of 4W
    l = jnp.arange(lt, dtype=jnp.int32)
    tap_id = (2 * ((l // (2 * W)) % 2) + (l % 2)).reshape(1, lt)

    cost = pl.CostEstimate(
        flops=2 * N * (4 * Cout) * Cin * lanes + 8 * N * Cout * lanes,
        transcendentals=0,
        bytes_accessed=4 * (N * Cin * lanes + N * Cout * lanes
                            + 4 * Cout * Cin + 2 * Cout + lt),
    )

    y_flat = pl.pallas_call(
        _upx2_kernel,
        out_shape=jax.ShapeDtypeStruct((N, Cout, lanes), out_dtype),
        grid_spec=pltpu.PrefetchScalarGridSpec(
            num_scalar_prefetch=0,
            grid=(N, n_tiles),
            in_specs=[
                pl.BlockSpec((1, Cin, lt), lambda n, t: (n, 0, t)),
                pl.BlockSpec((4 * Cout, Cin), lambda n, t: (0, 0)),
                pl.BlockSpec((Cout, 2), lambda n, t: (0, 0)),
                pl.BlockSpec((1, lt), lambda n, t: (0, 0)),
            ],
            out_specs=pl.BlockSpec((1, Cout, lt), lambda n, t: (n, 0, t)),
        ),
        compiler_params=pltpu.CompilerParams(
            dimension_semantics=("parallel", "parallel"),
        ),
        cost_estimate=cost,
    )(x_up, w4, aux, tap_id)

    # metadata-only reshape: (h, dh, w, dw) flattened == (2h+dh, 2w+dw) flattened
    return y_flat.reshape(N, Cout, 2 * H, 2 * W)


def _reference_upx2(x, weight, bn_gamma, bn_beta, bn_mean, bn_var, prelu_alpha,
                    eps=1e-3):
    """Pure-JAX reference (ConvTranspose2d(2,2,stride=2) + inference BN + PReLU)."""
    N, Cin, H, W = x.shape
    Cout = weight.shape[1]
    # out[n, o, 2h+u, 2w+v] = sum_i x[n,i,h,w] * weight[i,o,u,v]
    t = jnp.einsum('nihw,iouv->nohuwv', x, weight)
    y = t.reshape(N, Cout, 2 * H, 2 * W)
    scale = bn_gamma / jnp.sqrt(bn_var + eps)
    shift = bn_beta - bn_mean * scale
    y = y * scale[None, :, None, None] + shift[None, :, None, None]
    y = jnp.where(y >= 0, y, prelu_alpha[None, :, None, None] * y)
    return y


if __name__ == "__main__":
    key = jax.random.PRNGKey(0)
    kx, kw, kg, kb, km, kv, ka = jax.random.split(key, 7)

    N, Cin, Cout, H, W = 2, 4, 8, 16, 16

    x = jax.random.normal(kx, (N, Cin, H, W), dtype=jnp.float32)
    weight = 0.2 * jax.random.normal(kw, (Cin, Cout, 2, 2), dtype=jnp.float32)
    bn_gamma = 1.0 + 0.1 * jax.random.normal(kg, (Cout,), dtype=jnp.float32)
    bn_beta = 0.1 * jax.random.normal(kb, (Cout,), dtype=jnp.float32)
    bn_mean = 0.1 * jax.random.normal(km, (Cout,), dtype=jnp.float32)
    bn_var = jnp.abs(jax.random.normal(kv, (Cout,), dtype=jnp.float32)) + 0.5
    prelu_alpha = 0.25 + 0.05 * jax.random.normal(ka, (Cout,), dtype=jnp.float32)

    out = upx2_forward(x, weight, bn_gamma, bn_beta, bn_mean, bn_var, prelu_alpha)
    out = jax.block_until_ready(out)

    ref = _reference_upx2(x, weight, bn_gamma, bn_beta, bn_mean, bn_var, prelu_alpha)
    ref = jax.block_until_ready(ref)

    assert out.shape == (N, Cout, 2 * H, 2 * W), out.shape
    assert jnp.allclose(out, ref, atol=1e-5, rtol=1e-5), \
        float(jnp.max(jnp.abs(out - ref)))

    print("KERNEL_OK")
</pallas_src>

<mosaic_0001>
module attributes {stable_mosaic.version = 11 : i64} {
  func.func @_upx2_kernel(%arg0: i32, %arg1: i32, %arg2: memref<1x4x1024xf32, #tpu.memory_space<vmem>>, %arg3: memref<32x4xf32, #tpu.memory_space<vmem>>, %arg4: memref<8x2xf32, #tpu.memory_space<vmem>>, %arg5: memref<1x1024xi32, #tpu.memory_space<vmem>>, %arg6: memref<1x8x1024xf32, #tpu.memory_space<vmem>>) attributes {dimension_semantics = [#tpu.dimension_semantics<parallel>, #tpu.dimension_semantics<parallel>], iteration_bounds = array<i64: 2, 1>, scalar_prefetch = 0 : i64, scratch_operands = 0 : i64, tpu.core_type = #tpu.core_type<tc>, window_params = [{transform_indices = @transform_0, window_bounds = array<i64: 1, 4, 1024>}, {pipeline_mode = #tpu.pipeline_mode<synchronous>, transform_indices = @transform_1, window_bounds = array<i64: 32, 4>}, {pipeline_mode = #tpu.pipeline_mode<synchronous>, transform_indices = @transform_2, window_bounds = array<i64: 8, 2>}, {pipeline_mode = #tpu.pipeline_mode<synchronous>, transform_indices = @transform_3, window_bounds = array<i64: 1, 1024>}, {transform_indices = @transform_4, window_bounds = array<i64: 1, 8, 1024>}]} {
    %c0 = arith.constant 0 : index
    %c0_0 = arith.constant 0 : index
    %c0_1 = arith.constant 0 : index
    %0 = vector.load %arg2[%c0, %c0_0, %c0_1] : memref<1x4x1024xf32, #tpu.memory_space<vmem>>, vector<1x4x1024xf32>
    %1 = vector.shape_cast %0 : vector<1x4x1024xf32> to vector<4x1024xf32>
    %c0_2 = arith.constant 0 : index
    %c0_3 = arith.constant 0 : index
    %2 = vector.load %arg3[%c0_2, %c0_3] : memref<32x4xf32, #tpu.memory_space<vmem>>, vector<32x4xf32>
    %cst = arith.constant dense<0.000000e+00> : vector<32x1024xf32>
    %3 = tpu.matmul %2, %1, %cst {dimension_numbers = #tpu.dot_dimension_numbers<[1], [0], [0], [1], [0, 0, 1, 1], [], []>} : vector<32x4xf32>, vector<4x1024xf32>, vector<32x1024xf32> -> vector<32x1024xf32>
    %c0_4 = arith.constant 0 : index
    %c0_5 = arith.constant 0 : index
    %4 = vector.load %arg5[%c0_4, %c0_5] : memref<1x1024xi32, #tpu.memory_space<vmem>>, vector<1x1024xi32>
    %c1_i32 = arith.constant 1 : i32
    %5 = vector.broadcast %c1_i32 : i32 to vector<1x1024xi32>
    %6 = arith.andi %4, %5 : vector<1x1024xi32>
    %c0_i32 = arith.constant 0 : i32
    %7 = vector.broadcast %c0_i32 : i32 to vector<1x1024xi32>
    %8 = arith.cmpi eq, %6, %7 : vector<1x1024xi32>
    %c2_i32 = arith.constant 2 : i32
    %9 = vector.broadcast %c2_i32 : i32 to vector<1x1024xi32>
    %10 = arith.andi %4, %9 : vector<1x1024xi32>
    %c0_i32_6 = arith.constant 0 : i32
    %11 = vector.broadcast %c0_i32_6 : i32 to vector<1x1024xi32>
    %12 = arith.cmpi eq, %10, %11 : vector<1x1024xi32>
    %13 = vector.extract_strided_slice %3 {offsets = [0, 0], sizes = [8, 1024], strides = [1, 1]} : vector<32x1024xf32> to vector<8x1024xf32>
    %14 = vector.extract_strided_slice %3 {offsets = [8, 0], sizes = [8, 1024], strides = [1, 1]} : vector<32x1024xf32> to vector<8x1024xf32>
    %15 = vector.shape_cast %8 : vector<1x1024xi1> to vector<1x1024xi1>
    %16 = vector.broadcast %15 : vector<1x1024xi1> to vector<8x1024xi1>
    %17 = arith.select %16, %13, %14 : vector<8x1024xi1>, vector<8x1024xf32>
    %18 = vector.extract_strided_slice %3 {offsets = [16, 0], sizes = [8, 1024], strides = [1, 1]} : vector<32x1024xf32> to vector<8x1024xf32>
    %19 = vector.extract_strided_slice %3 {offsets = [24, 0], sizes = [8, 1024], strides = [1, 1]} : vector<32x1024xf32> to vector<8x1024xf32>
    %20 = vector.shape_cast %8 : vector<1x1024xi1> to vector<1x1024xi1>
    %21 = vector.broadcast %20 : vector<1x1024xi1> to vector<8x1024xi1>
    %22 = arith.select %21, %18, %19 : vector<8x1024xi1>, vector<8x1024xf32>
    %23 = vector.shape_cast %12 : vector<1x1024xi1> to vector<1x1024xi1>
    %24 = vector.broadcast %23 : vector<1x1024xi1> to vector<8x1024xi1>
    %25 = arith.select %24, %17, %22 : vector<8x1024xi1>, vector<8x1024xf32>
    %c0_7 = arith.constant 0 : index
    %c0_8 = arith.constant 0 : index
    %26 = vector.load %arg4[%c0_7, %c0_8] : memref<8x2xf32, #tpu.memory_space<vmem>>, vector<8x1xf32>
    %c0_9 = arith.constant 0 : index
    %c1 = arith.constant 1 : index
    %27 = vector.load %arg4[%c0_9, %c1] : memref<8x2xf32, #tpu.memory_space<vmem>>, vector<8x1xf32>
    %28 = vector.broadcast %26 : vector<8x1xf32> to vector<8x1024xf32>
    %29 = arith.addf %25, %28 : vector<8x1024xf32>
    %cst_10 = arith.constant 0.000000e+00 : f32
    %30 = vector.broadcast %cst_10 : f32 to vector<8x1024xf32>
    %31 = arith.cmpf oge, %29, %30 : vector<8x1024xf32>
    %32 = vector.broadcast %27 : vector<8x1xf32> to vector<8x1024xf32>
    %33 = arith.mulf %32, %29 : vector<8x1024xf32>
    %34 = arith.select %31, %29, %33 : vector<8x1024xi1>, vector<8x1024xf32>
    %c0_11 = arith.constant 0 : index
    %c0_12 = arith.constant 0 : index
    %c0_13 = arith.constant 0 : index
    %35 = vector.load %arg6[%c0_11, %c0_12, %c0_13] : memref<1x8x1024xf32, #tpu.memory_space<vmem>>, vector<1x8x1024xf32>
    %36 = vector.shape_cast %35 : vector<1x8x1024xf32> to vector<8x1024xf32>
    %37 = vector.shape_cast %34 : vector<8x1024xf32> to vector<1x8x1024xf32>
    tpu.vector_store %arg6[%c0_11, %c0_12, %c0_13], %37 {strides = array<i32>} : memref<1x8x1024xf32, #tpu.memory_space<vmem>>, vector<1x8x1024xf32>,
    return
  }
  func.func @transform_0(%arg0: i32, %arg1: i32) -> (i32, i32, i32) {
    %c0_i32 = arith.constant 0 : i32
    %c0_i32_0 = arith.constant 0 : i32
    return %arg0, %c0_i32, %arg1 : i32, i32, i32
  }
  func.func @transform_1(%arg0: i32, %arg1: i32) -> (i32, i32) {
    %c0_i32 = arith.constant 0 : i32
    %c0_i32_0 = arith.constant 0 : i32
    %c0_i32_1 = arith.constant 0 : i32
    return %c0_i32, %c0_i32_0 : i32, i32
  }
  func.func @transform_2(%arg0: i32, %arg1: i32) -> (i32, i32) {
    %c0_i32 = arith.constant 0 : i32
    %c0_i32_0 = arith.constant 0 : i32
    %c0_i32_1 = arith.constant 0 : i32
    return %c0_i32, %c0_i32_0 : i32, i32
  }
  func.func @transform_3(%arg0: i32, %arg1: i32) -> (i32, i32) {
    %c0_i32 = arith.constant 0 : i32
    %c0_i32_0 = arith.constant 0 : i32
    %c0_i32_1 = arith.constant 0 : i32
    return %c0_i32, %c0_i32_0 : i32, i32
  }
  func.func @transform_4(%arg0: i32, %arg1: i32) -> (i32, i32, i32) {
    %c0_i32 = arith.constant 0 : i32
    %c0_i32_0 = arith.constant 0 : i32
    return %arg0, %c0_i32, %arg1 : i32, i32, i32
  }
}

</mosaic_0001>

<llo_original>
// kernel: tpu_custom_call.1
$region0: #{tpu_custom_call.1}
  #allocation0 [shape = 'u32[]', space=smem, size = 0x4, offset = 0x4, fixed_abs, tag = 'smem constant byte address 0x4 - core index']
  #allocation1 [shape = 'u32[144,128]{1,0:T(1,128)}', space=vmem, size = 0x12000, scoped, tag = 'internal scratch']
  %s0 = inlined_call_operand.hbm [shape: f32[2,4,1024], index: 0, kind: input, shape index: {}]
  %s1 = inlined_call_operand.vmem [shape: f32[32,4], index: 1, kind: input, shape index: {}]
  %s2 = inlined_call_operand.vmem [shape: f32[8,2], index: 2, kind: input, shape index: {}]
  %s3 = inlined_call_operand.vmem [shape: s32[1,1024], index: 3, kind: input, shape index: {}]
  %s4 = inlined_call_operand.hbm [shape: f32[2,8,1024], index: 4, kind: output, shape index: {}]
  %s5 = sld [smem:[#allocation0]]
  $region53: #{tpu_custom_call.1} parent=0
    _
  %s7 = ssub.s32 1, %s5
  %s8 = scalar_select 0, %s7, %s5
  $region1: #{tpu_custom_call.1} parent=0
    #allocation2 [shape = 'u8[32768]{0}', space=vmem, size = 0x8000, scoped, tag = 'input window, operand 0']
    #allocation3 [shape = 's32[2]{0}', space=sflag, size = 0x8, scoped, tag = 'scoped memory for tpu_custom_call.1']
    #allocation4 [shape = 's32[2]{0}', space=sflag, size = 0x8, scoped, tag = 'scoped memory for tpu_custom_call.1']
    #allocation5 [shape = 'u8[65536]{0}', space=vmem, size = 0x10000, scoped, tag = 'output window, operand 0']
    %9 = vsyncpa [#allocation3], 0
    %s10 = scalar_lea.sflag [#allocation3], 1
    %11 = vsyncpa %s10, 0
    %12 = vsyncpa [#allocation4], 0
    %s13 = scalar_lea.sflag [#allocation4], 1
    %14 = vsyncpa %s13, 0
    loop: start=0, step=1, limit=4
    $region2: #{tpu_custom_call.1} parent=1 // loop_pre_header
      _
    $region3: #{tpu_custom_call.1} parent=1 // loop_header
      %s16 = sphi 0, %s20
      %p17 = scmp.ge.s32.totalorder %s16, 4
      %s23 = sphi 0, %s35
      %s24 = sphi 0, %s31
      %s25 = sphi 0, %s23
      %s26 = sphi 0, %s24
      %s27 = sphi 0, %s25
      %s28 = sphi 0, %s26
      %s40 = sphi 0, %s42
      %s43 = sphi 0, %s40
      %s44 = sphi 0, %s43
      %s60 = sphi 0, %s44
      %s64 = sphi 0, %s64
      %s66 = sphi 0, %s64
      %s67 = sphi 0, %s66
      %s81 = sphi 0, %s67
      %s85 = sphi 0, %s85
      %s87 = sphi 0, %s85
      %s88 = sphi 0, %s87
      %s102 = sphi 0, %s88
      %s106 = sphi 0, %s106
      %s108 = sphi 0, %s106
      %s109 = sphi 0, %s108
      %s123 = sphi 0, %s109
      %s131 = sphi 0, %s133
      %s134 = sphi 0, %s131
      %s135 = sphi 0, %s134
      %s151 = sphi 0, %s135
    $region4: #{tpu_custom_call.1} parent=1 // loop_header_branch
      %19 = sbr.rel (%p17) target = $region8
    $region5: #{tpu_custom_call.1} parent=1 // loop_body
      %s21 = ssub.s32 %s16, 1
      %s22 = ssub.s32 %s16, 2
      %s29 = sadd.s32 1, %s24
      %p30 = scmp.ge.s32.totalorder %s29, 1
      %s31 = scalar_select %p30, 0, %s29
      %s32 = sadd.s32 1, %s23
      %s33 = scalar_select %p30, %s32, %s23
      %p34 = scmp.ge.s32.totalorder %s33, 2
      %s35 = scalar_select %p34, 0, %s33
      %s36 = ssub.s32 %s23, %s35
      %s37 = ssub.s32 %s24, %s31
      %s38 = sor.u32 %s36, %s37
      %p39 = scmp.eq.s32.totalorder %s38, 0
      %s41 = sadd.s32 %s40, 1
      %s42 = scalar_select %p39, %s40, %s41
      %p45 = pneg %p39
      %p46 = scmp.eq.s32.totalorder %s16, 1
      %p47 = por %p45, %p46
      %p48 = scmp.ne.s32.totalorder %s40, %s43
      %p49 = scmp.eq.s32.totalorder %s16, 0
      %p50 = por %p48, %p49
      %p51 = scmp.ne.s32.totalorder %s40, %s43
      %p52 = scmp.eq.s32.totalorder %s21, 1
      %p53 = por %p51, %p52
      %p54 = scmp.ne.s32.totalorder %s43, %s44
      %p55 = scmp.eq.s32.totalorder %s21, 0
      %p56 = por %p54, %p55
      %p57 = scmp.ne.s32.totalorder %s43, %s44
      %p58 = scmp.eq.s32.totalorder %s22, 1
      %p59 = por %p57, %p58
      %p61 = scmp.ne.s32.totalorder %s44, %s60
      %p62 = scmp.eq.s32.totalorder %s22, 0
      %p63 = por %p61, %p62
      %s65 = sadd.s32 %s64, 1
      %p68 = scmp.eq.s32.totalorder %s16, 1
      %p69 = scmp.ne.s32.totalorder %s64, %s66
      %p70 = scmp.eq.s32.totalorder %s16, 0
      %p71 = por %p69, %p70
      %p72 = scmp.ne.s32.totalorder %s64, %s66
      %p73 = scmp.eq.s32.totalorder %s21, 1
      %p74 = por %p72, %p73
      %p75 = scmp.ne.s32.totalorder %s66, %s67
      %p76 = scmp.eq.s32.totalorder %s21, 0
      %p77 = por %p75, %p76
      %p78 = scmp.ne.s32.totalorder %s66, %s67
      %p79 = scmp.eq.s32.totalorder %s22, 1
      %p80 = por %p78, %p79
      %p82 = scmp.ne.s32.totalorder %s67, %s81
      %p83 = scmp.eq.s32.totalorder %s22, 0
      %p84 = por %p82, %p83
      %s86 = sadd.s32 %s85, 1
      %p89 = scmp.eq.s32.totalorder %s16, 1
      %p90 = scmp.ne.s32.totalorder %s85, %s87
      %p91 = scmp.eq.s32.totalorder %s16, 0
      %p92 = por %p90, %p91
      %p93 = scmp.ne.s32.totalorder %s85, %s87
      %p94 = scmp.eq.s32.totalorder %s21, 1
      %p95 = por %p93, %p94
      %p96 = scmp.ne.s32.totalorder %s87, %s88
      %p97 = scmp.eq.s32.totalorder %s21, 0
      %p98 = por %p96, %p97
      %p99 = scmp.ne.s32.totalorder %s87, %s88
      %p100 = scmp.eq.s32.totalorder %s22, 1
      %p101 = por %p99, %p100
      %p103 = scmp.ne.s32.totalorder %s88, %s102
      %p104 = scmp.eq.s32.totalorder %s22, 0
      %p105 = por %p103, %p104
      %s107 = sadd.s32 %s106, 1
      %p110 = scmp.eq.s32.totalorder %s16, 1
      %p111 = scmp.ne.s32.totalorder %s106, %s108
      %p112 = scmp.eq.s32.totalorder %s16, 0
      %p113 = por %p111, %p112
      %p114 = scmp.ne.s32.totalorder %s106, %s108
      %p115 = scmp.eq.s32.totalorder %s21, 1
      %p116 = por %p114, %p115
      %p117 = scmp.ne.s32.totalorder %s108, %s109
      %p118 = scmp.eq.s32.totalorder %s21, 0
      %p119 = por %p117, %p118
      %p120 = scmp.ne.s32.totalorder %s108, %s109
      %p121 = scmp.eq.s32.totalorder %s22, 1
      %p122 = por %p120, %p121
      %p124 = scmp.ne.s32.totalorder %s109, %s123
      %p125 = scmp.eq.s32.totalorder %s22, 0
      %p126 = por %p124, %p125
      %s127 = ssub.s32 %s23, %s35
      %s128 = ssub.s32 %s24, %s31
      %s129 = sor.u32 %s127, %s128
      %p130 = scmp.eq.s32.totalorder %s129, 0
      %s132 = sadd.s32 %s131, 1
      %s133 = scalar_select %p130, %s131, %s132
      %p136 = pneg %p130
      %p137 = scmp.eq.s32.totalorder %s16, 1
      %p138 = por %p136, %p137
      %p139 = scmp.ne.s32.totalorder %s131, %s134
      %p140 = scmp.eq.s32.totalorder %s16, 0
      %p141 = por %p139, %p140
      %p142 = scmp.ne.s32.totalorder %s131, %s134
      %p143 = scmp.eq.s32.totalorder %s21, 1
      %p144 = por %p142, %p143
      %p145 = scmp.ne.s32.totalorder %s134, %s135
      %p146 = scmp.eq.s32.totalorder %s21, 0
      %p147 = por %p145, %p146
      %p148 = scmp.ne.s32.totalorder %s134, %s135
      %p149 = scmp.eq.s32.totalorder %s22, 1
      %p150 = por %p148, %p149
      %p152 = scmp.ne.s32.totalorder %s135, %s151
      %p153 = scmp.eq.s32.totalorder %s22, 0
      %p154 = por %p152, %p153
      %p155 = scmp.le.s32.totalorder 1, %s16
      %p156 = scmp.lt.s32.totalorder %s16, 3
      %p157 = pnand %p155, %p156
      %p158 = pneg %p157
      // Predicated region
      $region9: #{tpu_custom_call.1} parent=5 // pred_check
        _
      $region10: #{tpu_custom_call.1} parent=5 // pred_check_branch
        %160 = sbr.rel (%p157) target = $region12
      $region11: #{tpu_custom_call.1} parent=5 // pred_region
        %s161 = ssub.s32 %s16, 1
        // Predicated region
        $region13: #{tpu_custom_call.1} parent=11 // pred_check
          %p162 = pneg %p77
        $region14: #{tpu_custom_call.1} parent=11 // pred_check_branch
          %164 = sbr.rel (%p162) target = $region16
        $region15: #{tpu_custom_call.1} parent=11 // pred_region
          _
        $region16: #{tpu_custom_call.1} parent=11 // pred_fallthru
          _
        // Predicated region
        $region17: #{tpu_custom_call.1} parent=11 // pred_check
          %p165 = pneg %p98
        $region18: #{tpu_custom_call.1} parent=11 // pred_check_branch
          %167 = sbr.rel (%p165) target = $region20
        $region19: #{tpu_custom_call.1} parent=11 // pred_region
          _
        $region20: #{tpu_custom_call.1} parent=11 // pred_fallthru
          _
        // Predicated region
        $region21: #{tpu_custom_call.1} parent=11 // pred_check
          %p168 = pneg %p119
        $region22: #{tpu_custom_call.1} parent=11 // pred_check_branch
          %170 = sbr.rel (%p168) target = $region24
        $region23: #{tpu_custom_call.1} parent=11 // pred_region
          _
        $region24: #{tpu_custom_call.1} parent=11 // pred_fallthru
          _
      $region12: #{tpu_custom_call.1} parent=5 // pred_fallthru
        _
      %p171 = scmp.lt.s32.totalorder %s16, 2
      // Predicated region
      $region25: #{tpu_custom_call.1} parent=5 // pred_check
        %p172 = pneg %p171
      $region26: #{tpu_custom_call.1} parent=5 // pred_check_branch
        %174 = sbr.rel (%p172) target = $region28
      $region27: #{tpu_custom_call.1} parent=5 // pred_region
        // Predicated region
        $region29: #{tpu_custom_call.1} parent=27 // pred_check
          %p175 = pneg %p50
        $region30: #{tpu_custom_call.1} parent=27 // pred_check_branch
          %177 = sbr.rel (%p175) target = $region32
        $region31: #{tpu_custom_call.1} parent=27 // pred_region
          %s178 = sand.u32 %s40, 1
          %s179 = scalar_lea.sflag [#allocation3], %s178
          %s180 = sand.u32 %s40, 1
          %s181 = smul.addr %s180, 32
          %s182 = scalar_lea.vmem [#allocation2], %s181
          %s183 = smul.u32 8, %s24
          %s185 = ssub.s32 512, 512
          %186 = vsyncadd %s179, %s185
          %s187 = smul.addr %s23, 8
          %s188 = sadd.s32 %s183, %s187
          %s189 = smul.addr %s188, 64
          %s190 = scalar_lea.hbm %s0, %s189
          %s192 = sshll.u32 %s182, 4
          %s193 = int_to_ptr.vmem [resolvable:$true] %s192
          %195 = dma.hbm_to_vmem [thread:$0]  %s190, 512, %s193, %s179
        $region32: #{tpu_custom_call.1} parent=27 // pred_fallthru
          _
      $region28: #{tpu_custom_call.1} parent=5 // pred_fallthru
        _
      %p196 = scmp.le.s32.totalorder 1, %s16
      %p197 = scmp.lt.s32.totalorder %s16, 3
      %p198 = pnand %p196, %p197
      %p199 = pneg %p198
      // Predicated region
      $region33: #{tpu_custom_call.1} parent=5 // pred_check
        _
      $region34: #{tpu_custom_call.1} parent=5 // pred_check_branch
        %201 = sbr.rel (%p198) target = $region36
      $region35: #{tpu_custom_call.1} parent=5 // pred_region
        %s202 = ssub.s32 %s16, 1
        %s203 = sand.u32 %s43, 1
        %s204 = scalar_lea.sflag [#allocation3], %s203
        %s205 = sand.u32 %s43, 1
        %s206 = smul.addr %s205, 32
        %s207 = scalar_lea.vmem [#allocation2], %s206
        // Predicated region
        $region37: #{tpu_custom_call.1} parent=35 // pred_check
          %p208 = pneg %p56
        $region38: #{tpu_custom_call.1} parent=35 // pred_check_branch
          %210 = sbr.rel (%p208) target = $region40
        $region39: #{tpu_custom_call.1} parent=35 // pred_region
          %211 = dma.done %s204, 512
        $region40: #{tpu_custom_call.1} parent=35 // pred_fallthru
          _
        %s212 = sand.u32 %s43, 1
        %s213 = scalar_lea.sflag [#allocation3], %s212
        %s214 = sand.u32 %s43, 1
        %s215 = smul.addr %s214, 32
        %s216 = scalar_lea.vmem [#allocation2], %s215
        %p217 = pneg %p56
        %p218 = pneg %p53
        %p219 = pneg %p77
        %p220 = pneg %p74
        %p221 = pneg %p98
        %p222 = pneg %p95
        %p223 = pneg %p119
        %p224 = pneg %p116
        %p225 = pneg %p147
        %p226 = pneg %p144
        %s227 = sand.u32 %s134, 1
        %s228 = scalar_lea.sflag [#allocation4], %s227
        %s229 = sand.u32 %s134, 1
        %s230 = smul.addr %s229, 64
        %s231 = scalar_lea.vmem [#allocation5], %s230
        %s232 = smul.u32 8, %s26
        %s233 = smul.u32 8, %s26
        %v234 = vld [vmem:[%s207] sm:$0xff]
        %v235 = vld [vmem:[%s207 + $0x8] sm:$0xff]
        %v236 = vld [vmem:[%s207 + $0x10] sm:$0xff]
        %v237 = vld [vmem:[%s207 + $0x18] sm:$0xff]
        %v238 = vld [vmem:[%s1] sm:$0xff]
        %v239 = vld [vmem:[%s1 + $0x8] sm:$0xff]
        %v240 = vld [vmem:[%s1 + $0x10] sm:$0xff]
        %v241 = vld [vmem:[%s1 + $0x18] sm:$0xff]
        %v246 = vcombine.high %v234, %v234
        %v247 = vcombine.high %v235, %v235
        %v248 = vcombine.high %v236, %v236
        %v249 = vcombine.high %v237, %v237
        %vm250 = vcmask 31744
        %v252 = vsel %vm250, %v238, 0
        %v255 = vsel %vm250, %v239, 0
        %v258 = vsel %vm250, %v240, 0
        %v261 = vsel %vm250, %v241, 0
        %vm263 = vcmask 1043456
        %v264 = vsel %vm263, %v234, 0
        %v266 = vsel %vm263, %v246, 0
        %v268 = vsel %vm263, %v235, 0
        %v270 = vsel %vm263, %v247, 0
        %v272 = vsel %vm263, %v236, 0
        %v274 = vsel %vm263, %v248, 0
        %v276 = vsel %vm263, %v237, 0
        %v278 = vsel %vm263, %v249, 0
        %280 = vmatprep.subr.mxu0 0.0
        %281 = vmatpush1.msra.mxu0 0.0
        %282 = vmatprep.subr.mxu0 0.0
        %283 = vmatpush1.msra.mxu0 0.0
        %284 = vmatprep.subr.mxu0 0.0
        %285 = vmatpush1.msra.mxu0 0.0
        %286 = vmatprep.subr.mxu0 0.0
        %287 = vmatpush1.msra.mxu0 0.0
        %288 = vmatprep.subr.mxu0 0.0
        %289 = vmatpush1.msra.mxu0 0.0
        %290 = vmatprep.subr.mxu0 0.0
        %291 = vmatpush1.msra.mxu0 0.0
        %292 = vmatprep.subr.mxu0 0.0
        %293 = vmatpush1.msra.mxu0 0.0
        %294 = vmatprep.subr.mxu0 0.0
        %295 = vmatpush1.msra.mxu0 0.0
        %296 = vmatprep.subr.mxu0 0.0
        %297 = vmatpush1.msra.mxu0 0.0
        %298 = vmatprep.subr.mxu0 0.0
        %299 = vmatpush1.msra.mxu0 0.0
        %300 = vmatprep.subr.mxu0 0.0
        %301 = vmatpush1.msra.mxu0 0.0
        %302 = vmatprep.subr.mxu0 0.0
        %303 = vmatpush1.msra.mxu0 0.0
        %304 = vmatprep.subr.mxu0 0.0
        %305 = vmatpush1.msra.mxu0 0.0
        %306 = vmatprep.subr.mxu0 0.0
        %307 = vmatpush1.msra.mxu0 0.0
        %308 = vmatprep.subr.mxu0 0.0
        %309 = vmatpush1.msra.mxu0 0.0
        %310 = vmatprep.subr.mxu0 %v266
        %311 = vmatpush1.msra.mxu0 %v264
        %312 = vmatprep.subr.mxu0 0.0
        %313 = vmatpush2.msra.mxu0 0.0
        %314 = vmatprep.subr.mxu0 0.0
        %315 = vmatpush2.msra.mxu0 0.0
        %316 = vmatprep.subr.mxu0 0.0
        %317 = vmatpush2.msra.mxu0 0.0
        %318 = vmatprep.subr.mxu0 0.0
        %319 = vmatpush2.msra.mxu0 0.0
        %320 = vmatprep.subr.mxu0 0.0
        %321 = vmatpush2.msra.mxu0 0.0
        %322 = vmatprep.subr.mxu0 0.0
        %323 = vmatpush2.msra.mxu0 0.0
        %324 = vmatprep.subr.mxu0 0.0
        %325 = vmatpush2.msra.mxu0 0.0
        %326 = vmatprep.subr.mxu0 0.0
        %327 = vmatpush2.msra.mxu0 0.0
        %328 = vmatprep.subr.mxu0 0.0
        %329 = vmatpush2.msra.mxu0 0.0
        %330 = vmatprep.subr.mxu0 0.0
        %331 = vmatpush2.msra.mxu0 0.0
        %332 = vmatprep.subr.mxu0 0.0
        %333 = vmatpush2.msra.mxu0 0.0
        %334 = vmatprep.subr.mxu0 0.0
        %335 = vmatpush2.msra.mxu0 0.0
        %336 = vmatprep.subr.mxu0 0.0
        %337 = vmatpush2.msra.mxu0 0.0
        %338 = vmatprep.subr.mxu0 0.0
        %339 = vmatpush2.msra.mxu0 0.0
        %340 = vmatprep.subr.mxu0 0.0
        %341 = vmatpush2.msra.mxu0 0.0
        %342 = vmatprep.subr.mxu0 0.0
        %343 = vmatpush2.msra.mxu0 0.0
        %344 = vmatprep.mubr.f32.mxu0 0.0
        %345 = vmatmul.mubr.f32.gmra.mxu0 %v252
        %v346 = vpop.f32.mrf.mxu0
        %v347 = vadd.f32 0.0, %v346
        %v348 = vpop.f32.mrf.mxu0
        %v349 = vadd.f32 0.0, %v348
        %350 = vmatprep.mubr.f32.mxu0 0.0
        %351 = vmatmul.mubr.f32.gmra.mxu0 %v255
        %v352 = vpop.f32.mrf.mxu0
        %v353 = vadd.f32 0.0, %v352
        %v354 = vpop.f32.mrf.mxu0
        %v355 = vadd.f32 0.0, %v354
        %356 = vmatprep.mubr.f32.mxu0 0.0
        %357 = vmatmul.mubr.f32.gmra.mxu0 %v258
        %v358 = vpop.f32.mrf.mxu0
        %v359 = vadd.f32 0.0, %v358
        %v360 = vpop.f32.mrf.mxu0
        %v361 = vadd.f32 0.0, %v360
        %362 = vmatprep.mubr.f32.mxu0 0.0
        %363 = vmatmul.mubr.f32.gmra.mxu0 %v261
        %v364 = vpop.f32.mrf.mxu0
        %v365 = vadd.f32 0.0, %v364
        %v366 = vpop.f32.mrf.mxu0
        %v367 = vadd.f32 0.0, %v366
        %368 = vdwg.mxu0
        %369 = vmatprep.subr.mxu0 0.0
        %370 = vmatpush1.msra.mxu0 0.0
        %371 = vmatprep.subr.mxu0 0.0
        %372 = vmatpush1.msra.mxu0 0.0
        %373 = vmatprep.subr.mxu0 0.0
        %374 = vmatpush1.msra.mxu0 0.0
        %375 = vmatprep.subr.mxu0 0.0
        %376 = vmatpush1.msra.mxu0 0.0
        %377 = vmatprep.subr.mxu0 0.0
        %378 = vmatpush1.msra.mxu0 0.0
        %379 = vmatprep.subr.mxu0 0.0
        %380 = vmatpush1.msra.mxu0 0.0
        %381 = vmatprep.subr.mxu0 0.0
        %382 = vmatpush1.msra.mxu0 0.0
        %383 = vmatprep.subr.mxu0 0.0
        %384 = vmatpush1.msra.mxu0 0.0
        %385 = vmatprep.subr.mxu0 0.0
        %386 = vmatpush1.msra.mxu0 0.0
        %387 = vmatprep.subr.mxu0 0.0
        %388 = vmatpush1.msra.mxu0 0.0
        %389 = vmatprep.subr.mxu0 0.0
        %390 = vmatpush1.msra.mxu0 0.0
        %391 = vmatprep.subr.mxu0 0.0
        %392 = vmatpush1.msra.mxu0 0.0
        %393 = vmatprep.subr.mxu0 0.0
        %394 = vmatpush1.msra.mxu0 0.0
        %395 = vmatprep.subr.mxu0 0.0
        %396 = vmatpush1.msra.mxu0 0.0
        %397 = vmatprep.subr.mxu0 0.0
        %398 = vmatpush1.msra.mxu0 0.0
        %399 = vmatprep.subr.mxu0 %v270
        %400 = vmatpush1.msra.mxu0 %v268
        %401 = vmatprep.subr.mxu0 0.0
        %402 = vmatpush2.msra.mxu0 0.0
        %403 = vmatprep.subr.mxu0 0.0
        %404 = vmatpush2.msra.mxu0 0.0
        %405 = vmatprep.subr.mxu0 0.0
        %406 = vmatpush2.msra.mxu0 0.0
        %407 = vmatprep.subr.mxu0 0.0
        %408 = vmatpush2.msra.mxu0 0.0
        %409 = vmatprep.subr.mxu0 0.0
        %410 = vmatpush2.msra.mxu0 0.0
        %411 = vmatprep.subr.mxu0 0.0
        %412 = vmatpush2.msra.mxu0 0.0
        %413 = vmatprep.subr.mxu0 0.0
        %414 = vmatpush2.msra.mxu0 0.0
        %415 = vmatprep.subr.mxu0 0.0
        %416 = vmatpush2.msra.mxu0 0.0
        %417 = vmatprep.subr.mxu0 0.0
        %418 = vmatpush2.msra.mxu0 0.0
        %419 = vmatprep.subr.mxu0 0.0
        %420 = vmatpush2.msra.mxu0 0.0
        %421 = vmatprep.subr.mxu0 0.0
        %422 = vmatpush2.msra.mxu0 0.0
        %423 = vmatprep.subr.mxu0 0.0
        %424 = vmatpush2.msra.mxu0 0.0
        %425 = vmatprep.subr.mxu0 0.0
        %426 = vmatpush2.msra.mxu0 0.0
        %427 = vmatprep.subr.mxu0 0.0
        %428 = vmatpush2.msra.mxu0 0.0
        %429 = vmatprep.subr.mxu0 0.0
        %430 = vmatpush2.msra.mxu0 0.0
        %431 = vmatprep.subr.mxu0 0.0
        %432 = vmatpush2.msra.mxu0 0.0
        %433 = vmatprep.mubr.f32.mxu0 0.0
        %434 = vmatmul.mubr.f32.gmra.mxu0 %v252
        %v435 = vpop.f32.mrf.mxu0
        %v436 = vadd.f32 0.0, %v435
        %v437 = vpop.f32.mrf.mxu0
        %v438 = vadd.f32 0.0, %v437
        %439 = vmatprep.mubr.f32.mxu0 0.0
        %440 = vmatmul.mubr.f32.gmra.mxu0 %v255
        %v441 = vpop.f32.mrf.mxu0
        %v442 = vadd.f32 0.0, %v441
        %v443 = vpop.f32.mrf.mxu0
        %v444 = vadd.f32 0.0, %v443
        %445 = vmatprep.mubr.f32.mxu0 0.0
        %446 = vmatmul.mubr.f32.gmra.mxu0 %v258
        %v447 = vpop.f32.mrf.mxu0
        %v448 = vadd.f32 0.0, %v447
        %v449 = vpop.f32.mrf.mxu0
        %v450 = vadd.f32 0.0, %v449
        %451 = vmatprep.mubr.f32.mxu0 0.0
        %452 = vmatmul.mubr.f32.gmra.mxu0 %v261
        %v453 = vpop.f32.mrf.mxu0
        %v454 = vadd.f32 0.0, %v453
        %v455 = vpop.f32.mrf.mxu0
        %v456 = vadd.f32 0.0, %v455
        %457 = vdwg.mxu0
        %458 = vmatprep.subr.mxu0 0.0
        %459 = vmatpush1.msra.mxu0 0.0
        %460 = vmatprep.subr.mxu0 0.0
        %461 = vmatpush1.msra.mxu0 0.0
        %462 = vmatprep.subr.mxu0 0.0
        %463 = vmatpush1.msra.mxu0 0.0
        %464 = vmatprep.subr.mxu0 0.0
        %465 = vmatpush1.msra.mxu0 0.0
        %466 = vmatprep.subr.mxu0 0.0
        %467 = vmatpush1.msra.mxu0 0.0
        %468 = vmatprep.subr.mxu0 0.0
        %469 = vmatpush1.msra.mxu0 0.0
        %470 = vmatprep.subr.mxu0 0.0
        %471 = vmatpush1.msra.mxu0 0.0
        %472 = vmatprep.subr.mxu0 0.0
        %473 = vmatpush1.msra.mxu0 0.0
        %474 = vmatprep.subr.mxu0 0.0
        %475 = vmatpush1.msra.mxu0 0.0
        %476 = vmatprep.subr.mxu0 0.0
        %477 = vmatpush1.msra.mxu0 0.0
        %478 = vmatprep.subr.mxu0 0.0
        %479 = vmatpush1.msra.mxu0 0.0
        %480 = vmatprep.subr.mxu0 0.0
        %481 = vmatpush1.msra.mxu0 0.0
        %482 = vmatprep.subr.mxu0 0.0
        %483 = vmatpush1.msra.mxu0 0.0
        %484 = vmatprep.subr.mxu0 0.0
        %485 = vmatpush1.msra.mxu0 0.0
        %486 = vmatprep.subr.mxu0 0.0
        %487 = vmatpush1.msra.mxu0 0.0
        %488 = vmatprep.subr.mxu0 %v274
        %489 = vmatpush1.msra.mxu0 %v272
        %490 = vmatprep.subr.mxu0 0.0
        %491 = vmatpush2.msra.mxu0 0.0
        %492 = vmatprep.subr.mxu0 0.0
        %493 = vmatpush2.msra.mxu0 0.0
        %494 = vmatprep.subr.mxu0 0.0
        %495 = vmatpush2.msra.mxu0 0.0
        %496 = vmatprep.subr.mxu0 0.0
        %497 = vmatpush2.msra.mxu0 0.0
        %498 = vmatprep.subr.mxu0 0.0
        %499 = vmatpush2.msra.mxu0 0.0
        %500 = vmatprep.subr.mxu0 0.0
        %501 = vmatpush2.msra.mxu0 0.0
        %502 = vmatprep.subr.mxu0 0.0
        %503 = vmatpush2.msra.mxu0 0.0
        %504 = vmatprep.subr.mxu0 0.0
        %505 = vmatpush2.msra.mxu0 0.0
        %506 = vmatprep.subr.mxu0 0.0
        %507 = vmatpush2.msra.mxu0 0.0
        %508 = vmatprep.subr.mxu0 0.0
        %509 = vmatpush2.msra.mxu0 0.0
        %510 = vmatprep.subr.mxu0 0.0
        %511 = vmatpush2.msra.mxu0 0.0
        %512 = vmatprep.subr.mxu0 0.0
        %513 = vmatpush2.msra.mxu0 0.0
        %514 = vmatprep.subr.mxu0 0.0
        %515 = vmatpush2.msra.mxu0 0.0
        %516 = vmatprep.subr.mxu0 0.0
        %517 = vmatpush2.msra.mxu0 0.0
        %518 = vmatprep.subr.mxu0 0.0
        %519 = vmatpush2.msra.mxu0 0.0
        %520 = vmatprep.subr.mxu0 0.0
        %521 = vmatpush2.msra.mxu0 0.0
        %522 = vmatprep.mubr.f32.mxu0 0.0
        %523 = vmatmul.mubr.f32.gmra.mxu0 %v252
        %v524 = vpop.f32.mrf.mxu0
        %v525 = vadd.f32 0.0, %v524
        %v526 = vpop.f32.mrf.mxu0
        %v527 = vadd.f32 0.0, %v526
        %528 = vmatprep.mubr.f32.mxu0 0.0
        %529 = vmatmul.mubr.f32.gmra.mxu0 %v255
        %v530 = vpop.f32.mrf.mxu0
        %v531 = vadd.f32 0.0, %v530
        %v532 = vpop.f32.mrf.mxu0
        %v533 = vadd.f32 0.0, %v532
        %534 = vmatprep.mubr.f32.mxu0 0.0
        %535 = vmatmul.mubr.f32.gmra.mxu0 %v258
        %v536 = vpop.f32.mrf.mxu0
        %v537 = vadd.f32 0.0, %v536
        %v538 = vpop.f32.mrf.mxu0
        %v539 = vadd.f32 0.0, %v538
        %540 = vmatprep.mubr.f32.mxu0 0.0
        %541 = vmatmul.mubr.f32.gmra.mxu0 %v261
        %v542 = vpop.f32.mrf.mxu0
        %v543 = vadd.f32 0.0, %v542
        %v544 = vpop.f32.mrf.mxu0
        %v545 = vadd.f32 0.0, %v544
        %546 = vdwg.mxu0
        %547 = vmatprep.subr.mxu0 0.0
        %548 = vmatpush1.msra.mxu0 0.0
        %549 = vmatprep.subr.mxu0 0.0
        %550 = vmatpush1.msra.mxu0 0.0
        %551 = vmatprep.subr.mxu0 0.0
        %552 = vmatpush1.msra.mxu0 0.0
        %553 = vmatprep.subr.mxu0 0.0
        %554 = vmatpush1.msra.mxu0 0.0
        %555 = vmatprep.subr.mxu0 0.0
        %556 = vmatpush1.msra.mxu0 0.0
        %557 = vmatprep.subr.mxu0 0.0
        %558 = vmatpush1.msra.mxu0 0.0
        %559 = vmatprep.subr.mxu0 0.0
        %560 = vmatpush1.msra.mxu0 0.0
        %561 = vmatprep.subr.mxu0 0.0
        %562 = vmatpush1.msra.mxu0 0.0
        %563 = vmatprep.subr.mxu0 0.0
        %564 = vmatpush1.msra.mxu0 0.0
        %565 = vmatprep.subr.mxu0 0.0
        %566 = vmatpush1.msra.mxu0 0.0
        %567 = vmatprep.subr.mxu0 0.0
        %568 = vmatpush1.msra.mxu0 0.0
        %569 = vmatprep.subr.mxu0 0.0
        %570 = vmatpush1.msra.mxu0 0.0
        %571 = vmatprep.subr.mxu0 0.0
        %572 = vmatpush1.msra.mxu0 0.0
        %573 = vmatprep.subr.mxu0 0.0
        %574 = vmatpush1.msra.mxu0 0.0
        %575 = vmatprep.subr.mxu0 0.0
        %576 = vmatpush1.msra.mxu0 0.0
        %577 = vmatprep.subr.mxu0 %v278
        %578 = vmatpush1.msra.mxu0 %v276
        %579 = vmatprep.subr.mxu0 0.0
        %580 = vmatpush2.msra.mxu0 0.0
        %581 = vmatprep.subr.mxu0 0.0
        %582 = vmatpush2.msra.mxu0 0.0
        %583 = vmatprep.subr.mxu0 0.0
        %584 = vmatpush2.msra.mxu0 0.0
        %585 = vmatprep.subr.mxu0 0.0
        %586 = vmatpush2.msra.mxu0 0.0
        %587 = vmatprep.subr.mxu0 0.0
        %588 = vmatpush2.msra.mxu0 0.0
        %589 = vmatprep.subr.mxu0 0.0
        %590 = vmatpush2.msra.mxu0 0.0
        %591 = vmatprep.subr.mxu0 0.0
        %592 = vmatpush2.msra.mxu0 0.0
        %593 = vmatprep.subr.mxu0 0.0
        %594 = vmatpush2.msra.mxu0 0.0
        %595 = vmatprep.subr.mxu0 0.0
        %596 = vmatpush2.msra.mxu0 0.0
        %597 = vmatprep.subr.mxu0 0.0
        %598 = vmatpush2.msra.mxu0 0.0
        %599 = vmatprep.subr.mxu0 0.0
        %600 = vmatpush2.msra.mxu0 0.0
        %601 = vmatprep.subr.mxu0 0.0
        %602 = vmatpush2.msra.mxu0 0.0
        %603 = vmatprep.subr.mxu0 0.0
        %604 = vmatpush2.msra.mxu0 0.0
        %605 = vmatprep.subr.mxu0 0.0
        %606 = vmatpush2.msra.mxu0 0.0
        %607 = vmatprep.subr.mxu0 0.0
        %608 = vmatpush2.msra.mxu0 0.0
        %609 = vmatprep.subr.mxu0 0.0
        %610 = vmatpush2.msra.mxu0 0.0
        %611 = vmatprep.mubr.f32.mxu0 0.0
        %612 = vmatmul.mubr.f32.gmra.mxu0 %v252
        %v613 = vpop.f32.mrf.mxu0
        %v614 = vadd.f32 0.0, %v613
        %v615 = vpop.f32.mrf.mxu0
        %v616 = vadd.f32 0.0, %v615
        %617 = vmatprep.mubr.f32.mxu0 0.0
        %618 = vmatmul.mubr.f32.gmra.mxu0 %v255
        %v619 = vpop.f32.mrf.mxu0
        %v620 = vadd.f32 0.0, %v619
        %v621 = vpop.f32.mrf.mxu0
        %v622 = vadd.f32 0.0, %v621
        %623 = vmatprep.mubr.f32.mxu0 0.0
        %624 = vmatmul.mubr.f32.gmra.mxu0 %v258
        %v625 = vpop.f32.mrf.mxu0
        %v626 = vadd.f32 0.0, %v625
        %v627 = vpop.f32.mrf.mxu0
        %v628 = vadd.f32 0.0, %v627
        %629 = vmatprep.mubr.f32.mxu0 0.0
        %630 = vmatmul.mubr.f32.gmra.mxu0 %v261
        %v631 = vpop.f32.mrf.mxu0
        %v632 = vadd.f32 0.0, %v631
        %v633 = vpop.f32.mrf.mxu0
        %v634 = vadd.f32 0.0, %v633
        %635 = vdwg.mxu0
        %v636 = vld [vmem:[%s3] sm:$0xff]
        %v637 = vand.u32 %v636, 1
        %vm638 = vcmp.eq.s32.totalorder %v637, 0
        %v639 = vand.u32 %v636, 2
        %vm640 = vcmp.eq.s32.totalorder %v639, 0
        %v641 = vsel %vm638, 1, 0
        %v642 = vlaneseq
        %v643 = vshrl.u32 %v642, 7
        %v644 = vsub.s32 0, %v643
        %v645 = vrot.slane %v641, %v644
        %v646 = vlaneseq
        %v647 = vshrl.u32 %v646, 7
        %v648 = vsub.s32 1, %v647
        %v649 = vrot.slane %v641, %v648
        %v650 = vlaneseq
        %v651 = vshrl.u32 %v650, 7
        %v652 = vsub.s32 2, %v651
        %v653 = vrot.slane %v641, %v652
        %v654 = vlaneseq
        %v655 = vshrl.u32 %v654, 7
        %v656 = vsub.s32 3, %v655
        %v657 = vrot.slane %v641, %v656
        %v658 = vlaneseq
        %v659 = vshrl.u32 %v658, 7
        %v660 = vsub.s32 4, %v659
        %v661 = vrot.slane %v641, %v660
        %v662 = vlaneseq
        %v663 = vshrl.u32 %v662, 7
        %v664 = vsub.s32 5, %v663
        %v665 = vrot.slane %v641, %v664
        %v666 = vlaneseq
        %v667 = vshrl.u32 %v666, 7
        %v668 = vsub.s32 6, %v667
        %v669 = vrot.slane %v641, %v668
        %v670 = vlaneseq
        %v671 = vshrl.u32 %v670, 7
        %v672 = vsub.s32 7, %v671
        %v673 = vrot.slane %v641, %v672
        %vm674 = vcmp.eq.s32.totalorder %v645, 1
        %vm675 = vcmp.eq.s32.totalorder %v649, 1
        %vm676 = vcmp.eq.s32.totalorder %v653, 1
        %vm677 = vcmp.eq.s32.totalorder %v657, 1
        %vm678 = vcmp.eq.s32.totalorder %v661, 1
        %vm679 = vcmp.eq.s32.totalorder %v665, 1
        %vm680 = vcmp.eq.s32.totalorder %v669, 1
        %vm681 = vcmp.eq.s32.totalorder %v673, 1
        %v682 = vsel %vm674, %v347, %v353
        %v683 = vsel %vm675, %v349, %v355
        %v684 = vsel %vm676, %v436, %v442
        %v685 = vsel %vm677, %v438, %v444
        %v686 = vsel %vm678, %v525, %v531
        %v687 = vsel %vm679, %v527, %v533
        %v688 = vsel %vm680, %v614, %v620
        %v689 = vsel %vm681, %v616, %v622
        %v690 = vsel %vm674, %v359, %v365
        %v691 = vsel %vm675, %v361, %v367
        %v692 = vsel %vm676, %v448, %v454
        %v693 = vsel %vm677, %v450, %v456
        %v694 = vsel %vm678, %v537, %v543
        %v695 = vsel %vm679, %v539, %v545
        %v696 = vsel %vm680, %v626, %v632
        %v697 = vsel %vm681, %v628, %v634
        %v698 = vsel %vm640, 1, 0
        %v699 = vlaneseq
        %v700 = vshrl.u32 %v699, 7
        %v701 = vsub.s32 0, %v700
        %v702 = vrot.slane %v698, %v701
        %v703 = vlaneseq
        %v704 = vshrl.u32 %v703, 7
        %v705 = vsub.s32 1, %v704
        %v706 = vrot.slane %v698, %v705
        %v707 = vlaneseq
        %v708 = vshrl.u32 %v707, 7
        %v709 = vsub.s32 2, %v708
        %v710 = vrot.slane %v698, %v709
        %v711 = vlaneseq
        %v712 = vshrl.u32 %v711, 7
        %v713 = vsub.s32 3, %v712
        %v714 = vrot.slane %v698, %v713
        %v715 = vlaneseq
        %v716 = vshrl.u32 %v715, 7
        %v717 = vsub.s32 4, %v716
        %v718 = vrot.slane %v698, %v717
        %v719 = vlaneseq
        %v720 = vshrl.u32 %v719, 7
        %v721 = vsub.s32 5, %v720
        %v722 = vrot.slane %v698, %v721
        %v723 = vlaneseq
        %v724 = vshrl.u32 %v723, 7
        %v725 = vsub.s32 6, %v724
        %v726 = vrot.slane %v698, %v725
        %v727 = vlaneseq
        %v728 = vshrl.u32 %v727, 7
        %v729 = vsub.s32 7, %v728
        %v730 = vrot.slane %v698, %v729
        %vm731 = vcmp.eq.s32.totalorder %v702, 1
        %vm732 = vcmp.eq.s32.totalorder %v706, 1
        %vm733 = vcmp.eq.s32.totalorder %v710, 1
        %vm734 = vcmp.eq.s32.totalorder %v714, 1
        %vm735 = vcmp.eq.s32.totalorder %v718, 1
        %vm736 = vcmp.eq.s32.totalorder %v722, 1
        %vm737 = vcmp.eq.s32.totalorder %v726, 1
        %vm738 = vcmp.eq.s32.totalorder %v730, 1
        %v739 = vsel %vm731, %v682, %v690
        %v740 = vsel %vm732, %v683, %v691
        %v741 = vsel %vm733, %v684, %v692
        %v742 = vsel %vm734, %v685, %v693
        %v743 = vsel %vm735, %v686, %v694
        %v744 = vsel %vm736, %v687, %v695
        %v745 = vsel %vm737, %v688, %v696
        %v746 = vsel %vm738, %v689, %v697
        %v747 = vld [vmem:[%s2] sm:$0xff]
        %749 = vset.pattern.permute.xlu0 0
        %750 = vperm.xlu0 %749, %v747
        %v751 = vpop.permute.xlu0 %750
        %v753 = vadd.f32 %v739, %v751
        %v754 = vadd.f32 %v740, %v751
        %v755 = vadd.f32 %v741, %v751
        %v756 = vadd.f32 %v742, %v751
        %v757 = vadd.f32 %v743, %v751
        %v758 = vadd.f32 %v744, %v751
        %v759 = vadd.f32 %v745, %v751
        %v760 = vadd.f32 %v746, %v751
        %vm761 = vcmp.ge.f32.partialorder %v753, 0.0
        %vm762 = vcmp.ge.f32.partialorder %v754, 0.0
        %vm763 = vcmp.ge.f32.partialorder %v755, 0.0
        %vm764 = vcmp.ge.f32.partialorder %v756, 0.0
        %vm765 = vcmp.ge.f32.partialorder %v757, 0.0
        %vm766 = vcmp.ge.f32.partialorder %v758, 0.0
        %vm767 = vcmp.ge.f32.partialorder %v759, 0.0
        %vm768 = vcmp.ge.f32.partialorder %v760, 0.0
        %769 = vset.pattern.permute.xlu0 1
        %770 = vperm.xlu0 %769, %v747
        %v771 = vpop.permute.xlu0 %770
        %v773 = vmul.f32 %v771, %v753
        %v774 = vmul.f32 %v771, %v754
        %v775 = vmul.f32 %v771, %v755
        %v776 = vmul.f32 %v771, %v756
        %v777 = vmul.f32 %v771, %v757
        %v778 = vmul.f32 %v771, %v758
        %v779 = vmul.f32 %v771, %v759
        %v780 = vmul.f32 %v771, %v760
        %v781 = vsel %vm761, %v753, %v773
        %v782 = vsel %vm762, %v754, %v774
        %v783 = vsel %vm763, %v755, %v775
        %v784 = vsel %vm764, %v756, %v776
        %v785 = vsel %vm765, %v757, %v777
        %v786 = vsel %vm766, %v758, %v778
        %v787 = vsel %vm767, %v759, %v779
        %v788 = vsel %vm768, %v760, %v780
        %789 = vst [vmem:[%s231] sm:$0xff] %v781
        %790 = vst [vmem:[%s231 + $0x8] sm:$0xff] %v782
        %791 = vst [vmem:[%s231 + $0x10] sm:$0xff] %v783
        %792 = vst [vmem:[%s231 + $0x18] sm:$0xff] %v784
        %793 = vst [vmem:[%s231 + $0x20] sm:$0xff] %v785
        %794 = vst [vmem:[%s231 + $0x28] sm:$0xff] %v786
        %795 = vst [vmem:[%s231 + $0x30] sm:$0xff] %v787
        %796 = vst [vmem:[%s231 + $0x38] sm:$0xff] %v788
        %s797 = sand.u32 %s134, 1
        %s798 = scalar_lea.sflag [#allocation4], %s797
        %s799 = sand.u32 %s134, 1
        %s800 = smul.addr %s799, 64
        %s801 = scalar_lea.vmem [#allocation5], %s800
        // Predicated region
        $region41: #{tpu_custom_call.1} parent=35 // pred_check
          %p802 = pneg %p144
        $region42: #{tpu_custom_call.1} parent=35 // pred_check_branch
          %804 = sbr.rel (%p802) target = $region44
        $region43: #{tpu_custom_call.1} parent=35 // pred_region
          %s805 = smul.u32 8, %s26
          %s807 = ssub.s32 1024, 1024
          %808 = vsyncadd %s798, %s807
          %s809 = smul.addr %s25, 8
          %s810 = sadd.s32 %s805, %s809
          %s811 = smul.addr %s810, 128
          %s812 = scalar_lea.hbm %s4, %s811
          %s814 = sshll.u32 %s801, 4
          %s815 = int_to_ptr.vmem [resolvable:$true] %s814
          %817 = dma.vmem_to_hbm [thread:$0]  %s815, 1024, %s812, %s798
        $region44: #{tpu_custom_call.1} parent=35 // pred_fallthru
          _
      $region36: #{tpu_custom_call.1} parent=5 // pred_fallthru
        _
      %p818 = scmp.le.s32.totalorder 2, %s16
      // Predicated region
      $region45: #{tpu_custom_call.1} parent=5 // pred_check
        %p819 = pneg %p818
      $region46: #{tpu_custom_call.1} parent=5 // pred_check_branch
        %821 = sbr.rel (%p819) target = $region48
      $region47: #{tpu_custom_call.1} parent=5 // pred_region
        %s822 = ssub.s32 %s16, 2
        // Predicated region
        $region49: #{tpu_custom_call.1} parent=47 // pred_check
          %p823 = pneg %p150
        $region50: #{tpu_custom_call.1} parent=47 // pred_check_branch
          %825 = sbr.rel (%p823) target = $region52
        $region51: #{tpu_custom_call.1} parent=47 // pred_region
          %s826 = sand.u32 %s135, 1
          %s827 = scalar_lea.sflag [#allocation4], %s826
          %s828 = sand.u32 %s135, 1
          %s829 = smul.addr %s828, 64
          %s830 = scalar_lea.vmem [#allocation5], %s829
          %831 = dma.done %s827, 1024
        $region52: #{tpu_custom_call.1} parent=47 // pred_fallthru
          _
      $region48: #{tpu_custom_call.1} parent=5 // pred_fallthru
        _
    $region6: #{tpu_custom_call.1} parent=1 // loop_footer
      %s20 = sadd.s32 1, %s16
    $region7: #{tpu_custom_call.1} parent=1 // loop_footer_branch
      %15 = sbr.rel target = $region3
    $region8: #{tpu_custom_call.1} parent=1 // loop_exit
      _
    %832 = vsyncpa [#allocation3], 1
    %s833 = scalar_lea.sflag [#allocation3], 1
    %834 = vsyncpa %s833, 1
    %835 = vsyncpa [#allocation4], 1
    %s836 = scalar_lea.sflag [#allocation4], 1
    %837 = vsyncpa %s836, 1

</llo_original>
